<compile_context>
chip_gen: v6e
topology: v6e:2x2x1
jax: 0.10.0
libtpu: 0.0.40
codegen_flags: <defaults>
</compile_context>

<pallas_src>
import functools

import jax
import jax.numpy as jnp
from jax.experimental import pallas as pl
from jax.experimental.pallas import tpu as pltpu

STATE_SIZE = 24
ACTION_SIZE = 2
PACK = 32            # packed input width: [state(24) | action(2) | zeros(6)]
FC1 = 128
FC2 = 128
BN_EPS = 1e-5

assert FC1 == FC2, "the (8,128) vector slab packs FC1- and FC2-wide vectors"

# Row layout of the packed (8, 128) per-feature vector slab.
ROW_B1 = 0      # fc1 bias
ROW_GAMMA = 1   # bn1 weight
ROW_BETA = 2    # bn1 bias
ROW_B2 = 3      # fc2 bias
ROW_W3 = 4      # fc3 weight, transposed to a (FC2,) row
ROW_B3 = 5      # fc3 bias (broadcast across lanes; lane 0 used)

# Row layout of the (8, 128) BN-statistics slab produced by the stats pass.
ROW_SUM = 0     # per-feature sum of relu(fc1(state))
ROW_SSQ = 1     # per-feature sum of squares


def _fc1_relu(xp, w1_ref, vecs):
    """relu(packed @ w1_padded + b1) -> (TB, FC1) f32 (MXU, f32 accumulation)."""
    z = jnp.dot(xp, w1_ref[...], preferred_element_type=jnp.float32)
    return jnp.maximum(z + vecs[ROW_B1:ROW_B1 + 1, :], 0.0)


def _bn_fc2_fc3(xp, z, mean, mean_sq, w2s_ref, w2a_ref, vecs, out_ref):
    """Fused BN scale/shift + fc2 (+ action term) + relu + fc3 (lane-dense)."""
    gamma = vecs[ROW_GAMMA:ROW_GAMMA + 1, :]
    beta = vecs[ROW_BETA:ROW_BETA + 1, :]
    b2 = vecs[ROW_B2:ROW_B2 + 1, :]
    w3_row = vecs[ROW_W3:ROW_W3 + 1, :]
    b3 = vecs[ROW_B3:ROW_B3 + 1, 0:1]                     # (1, 1)

    # One-pass statistics (clamped for numerical safety); rsqrt -> EUP slot.
    var = jnp.maximum(mean_sq - mean * mean, 0.0)
    scale = gamma * jax.lax.rsqrt(var + BN_EPS)
    shift = beta - mean * scale
    x_bn = z * scale + shift

    # fc2 over cat(x_bn, action): state part and (zero-padded) action part are
    # both MXU matmuls; no lane broadcasts of (B,1) action columns.
    h = jnp.dot(x_bn.astype(w2s_ref.dtype), w2s_ref[...],
                preferred_element_type=jnp.float32)
    h = h + jnp.dot(xp, w2a_ref[...], preferred_element_type=jnp.float32) + b2
    h = jnp.maximum(h, 0.0)

    # fc3 on the MXU with a lane-dense (1, TB) result: contract the 128-feature
    # dim of w3_row (1,128) against h (TB,128), i.e. w3_row @ h.T.
    q = jax.lax.dot_general(w3_row, h, (((1,), (1,)), ((), ())),
                            preferred_element_type=jnp.float32) + b3
    out_ref[...] = q.astype(out_ref.dtype)


def _critic_fused_kernel(xp_ref, w1_ref, w2s_ref, w2a_ref, vec_ref, out_ref):
    """Single-tile path: the whole batch is resident, BN stats computed inline."""
    vecs = vec_ref[...]
    xp = xp_ref[...]
    z = _fc1_relu(xp, w1_ref, vecs)
    mean = jnp.mean(z, axis=0, keepdims=True)
    mean_sq = jnp.mean(z * z, axis=0, keepdims=True)
    _bn_fc2_fc3(xp, z, mean, mean_sq, w2s_ref, w2a_ref, vecs, out_ref)


def _bn_stats_kernel(xp_ref, w1_ref, vec_ref, stats_ref):
    """Tiled path, phase 1: accumulate per-feature sum / sum-of-squares."""
    @pl.when(pl.program_id(0) == 0)
    def _():
        stats_ref[...] = jnp.zeros_like(stats_ref)

    z = _fc1_relu(xp_ref[...], w1_ref, vec_ref[...])
    stats_ref[ROW_SUM:ROW_SUM + 1, :] += jnp.sum(z, axis=0, keepdims=True)
    stats_ref[ROW_SSQ:ROW_SSQ + 1, :] += jnp.sum(z * z, axis=0, keepdims=True)


def _critic_tile_kernel(xp_ref, w1_ref, w2s_ref, w2a_ref, vec_ref, stats_ref,
                        out_ref, *, inv_b):
    """Tiled path, phase 2: recompute cheap fc1, BN with global stats, fc2/fc3."""
    vecs = vec_ref[...]
    xp = xp_ref[...]
    z = _fc1_relu(xp, w1_ref, vecs)
    mean = stats_ref[ROW_SUM:ROW_SUM + 1, :] * inv_b
    mean_sq = stats_ref[ROW_SSQ:ROW_SSQ + 1, :] * inv_b
    _bn_fc2_fc3(xp, z, mean, mean_sq, w2s_ref, w2a_ref, vecs, out_ref)


def _pick_batch_tile(B):
    # Large tiles keep the MXU fed and amortize per-step overhead; fall back to
    # a single tile when B has no convenient divisor (still fine up to a few
    # thousand rows of f32 intermediates in VMEM).
    for tb in (512, 256, 128):
        if B % tb == 0:
            return tb
    return B


def critic_forward(state, action, params, *, use_bf16=True, batch_tile=None):
    if state.ndim == 1:
        state = state[None, :]
    if action.ndim == 1:
        action = action[None, :]
    B = state.shape[0]
    TB = batch_tile if batch_tile is not None else _pick_batch_tile(B)
    assert B % TB == 0, "batch_tile must divide the batch size"
    n_tiles = B // TB

    mxu_dtype = jnp.bfloat16 if use_bf16 else jnp.float32
    isz = jnp.dtype(mxu_dtype).itemsize

    # Pack state and action into one lane-dense (B, 32) operand: one DMA, and
    # the same operand drives both the fc1 matmul and the fc2 action matmul.
    packed = jnp.zeros((B, PACK), mxu_dtype)
    packed = packed.at[:, :STATE_SIZE].set(state.astype(mxu_dtype))
    packed = packed.at[:, STATE_SIZE:STATE_SIZE + ACTION_SIZE].set(
        action.astype(mxu_dtype))

    w1p = params["w1p"].astype(mxu_dtype)
    w2s = params["w2s"].astype(mxu_dtype)
    w2ap = params["w2ap"].astype(mxu_dtype)
    vecs = params["vecs"]                                  # stays f32

    weight_bytes = (PACK * FC1 + FC1 * FC2 + PACK * FC2) * isz + 8 * FC1 * 4
    main_cost = pl.CostEstimate(
        flops=2 * B * (PACK * FC1 + FC1 * FC2 + PACK * FC2 + FC2),
        transcendentals=FC1,
        bytes_accessed=B * PACK * isz + weight_bytes + B * 4)

    if n_tiles == 1:
        vmem = pl.BlockSpec(memory_space=pltpu.MemorySpace.VMEM)
        q_row = pl.pallas_call(
            _critic_fused_kernel,
            out_shape=jax.ShapeDtypeStruct((1, B), jnp.float32),
            in_specs=[vmem] * 5,
            out_specs=vmem,
            cost_estimate=main_cost,
        )(packed, w1p, w2s, w2ap, vecs)
    else:
        stats_cost = pl.CostEstimate(
            flops=2 * B * PACK * FC1 + 3 * B * FC1,
            transcendentals=0,
            bytes_accessed=B * PACK * isz + PACK * FC1 * isz + 2 * 8 * FC1 * 4)

        # Phase 1: global BN statistics (accumulator resident across the grid).
        stats = pl.pallas_call(
            _bn_stats_kernel,
            out_shape=jax.ShapeDtypeStruct((8, FC1), jnp.float32),
            grid=(n_tiles,),
            in_specs=[
                pl.BlockSpec((TB, PACK), lambda i: (i, 0)),
                pl.BlockSpec((PACK, FC1), lambda i: (0, 0)),
                pl.BlockSpec((8, FC1), lambda i: (0, 0)),
            ],
            out_specs=pl.BlockSpec((8, FC1), lambda i: (0, 0)),
            compiler_params=pltpu.CompilerParams(
                dimension_semantics=("arbitrary",)),
            cost_estimate=stats_cost,
        )(packed, w1p, vecs)

        # Phase 2: per-tile normalize + fc2 + fc3, batch axis fully parallel.
        q_row = pl.pallas_call(
            functools.partial(_critic_tile_kernel, inv_b=1.0 / B),
            out_shape=jax.ShapeDtypeStruct((1, B), jnp.float32),
            grid=(n_tiles,),
            in_specs=[
                pl.BlockSpec((TB, PACK), lambda i: (i, 0)),
                pl.BlockSpec((PACK, FC1), lambda i: (0, 0)),
                pl.BlockSpec((FC1, FC2), lambda i: (0, 0)),
                pl.BlockSpec((PACK, FC2), lambda i: (0, 0)),
                pl.BlockSpec((8, FC1), lambda i: (0, 0)),
                pl.BlockSpec((8, FC1), lambda i: (0, 0)),
            ],
            out_specs=pl.BlockSpec((1, TB), lambda i: (0, i)),
            compiler_params=pltpu.CompilerParams(
                dimension_semantics=("parallel",)),
            cost_estimate=main_cost,
        )(packed, w1p, w2s, w2ap, vecs, stats)

    # (1, B) lane-dense kernel output -> (B, 1) to match the PyTorch module.
    return q_row.reshape(B, 1)


def init_params(key):
    """Parameter init mirroring the PyTorch module's shapes/ranges.

    fc1: (24 -> 128), fc2: (130 -> 128) split into state/action parts,
    fc3: (128 -> 1), bn1: gamma/beta over 128 features.  fc1 and the fc2
    action rows are zero-padded to K=32 so they consume the packed input,
    and all per-feature vectors are packed into a single (8, 128) slab.
    """
    k = jax.random.split(key, 6)
    lim1 = 1.0 / jnp.sqrt(jnp.float32(FC1))            # hidden_init(fc1)
    lim2 = 1.0 / jnp.sqrt(jnp.float32(FC2))            # hidden_init(fc2)
    blim1 = 1.0 / jnp.sqrt(jnp.float32(STATE_SIZE))    # default bias init
    blim2 = 1.0 / jnp.sqrt(jnp.float32(FC1 + ACTION_SIZE))
    blim3 = 1.0 / jnp.sqrt(jnp.float32(FC2))

    w1 = jax.random.uniform(k[0], (STATE_SIZE, FC1), jnp.float32, -lim1, lim1)
    b1 = jax.random.uniform(k[1], (FC1,), jnp.float32, -blim1, blim1)
    gamma = jnp.ones((FC1,), jnp.float32)
    beta = jnp.zeros((FC1,), jnp.float32)
    w2_full = jax.random.uniform(k[2], (FC1 + ACTION_SIZE, FC2),
                                 jnp.float32, -lim2, lim2)
    w2s = w2_full[:FC1, :]                       # (128, 128)
    w2a = w2_full[FC1:, :]                       # (2, 128)
    b2 = jax.random.uniform(k[3], (FC2,), jnp.float32, -blim2, blim2)
    w3 = jax.random.uniform(k[4], (FC2, 1), jnp.float32, -0.003, 0.003)
    b3 = jax.random.uniform(k[5], (1,), jnp.float32, -blim3, blim3)

    w1p = jnp.zeros((PACK, FC1), jnp.float32).at[:STATE_SIZE, :].set(w1)
    w2ap = jnp.zeros((PACK, FC2), jnp.float32)
    w2ap = w2ap.at[STATE_SIZE:STATE_SIZE + ACTION_SIZE, :].set(w2a)

    vecs = jnp.zeros((8, FC1), jnp.float32)
    vecs = vecs.at[ROW_B1].set(b1)
    vecs = vecs.at[ROW_GAMMA].set(gamma)
    vecs = vecs.at[ROW_BETA].set(beta)
    vecs = vecs.at[ROW_B2].set(b2)
    vecs = vecs.at[ROW_W3].set(w3[:, 0])
    vecs = vecs.at[ROW_B3].set(jnp.full((FC1,), b3[0], jnp.float32))

    return {
        # packed / fused layouts consumed by the kernels
        "w1p": w1p, "w2s": w2s, "w2ap": w2ap, "vecs": vecs,
        # unpacked copies kept only for the plain-JAX reference check
        "w1": w1, "_b1": b1, "_gamma": gamma, "_beta": beta,
        "_w2a": w2a, "_b2": b2, "_w3": w3, "_b3": b3,
    }


def critic_reference(state, action, p):
    """Plain-JAX reference of the same forward pass (PyTorch semantics)."""
    x = jnp.maximum(state @ p["w1"] + p["_b1"][None, :], 0.0)
    mean = jnp.mean(x, axis=0, keepdims=True)
    var = jnp.mean((x - mean) ** 2, axis=0, keepdims=True)
    x = (x - mean) / jnp.sqrt(var + BN_EPS) * p["_gamma"] + p["_beta"]
    h = jnp.maximum(x @ p["w2s"] + action @ p["_w2a"] + p["_b2"][None, :], 0.0)
    return h @ p["_w3"] + p["_b3"][None, :]


if __name__ == "__main__":
    key = jax.random.PRNGKey(0)
    kp, ks1, ka1, ks2, ka2 = jax.random.split(key, 5)
    params = init_params(kp)

    # 1) Small batch -> single fused tile, f32 MXU operands (tight check).
    B = 8
    state = jax.random.normal(ks1, (B, STATE_SIZE), jnp.float32)
    action = jax.random.uniform(ka1, (B, ACTION_SIZE), jnp.float32, -1.0, 1.0)
    q = jax.block_until_ready(
        critic_forward(state, action, params, use_bf16=False))
    q_ref = critic_reference(state, action, params)
    assert q.shape == (B, 1)
    assert jnp.allclose(q, q_ref, atol=1e-4, rtol=1e-4)

    # 2) Larger batch forced onto the two-phase tiled path (2 tiles of 128).
    B2 = 256
    state2 = jax.random.normal(ks2, (B2, STATE_SIZE), jnp.float32)
    action2 = jax.random.uniform(ka2, (B2, ACTION_SIZE), jnp.float32, -1.0, 1.0)
    q2 = jax.block_until_ready(
        critic_forward(state2, action2, params, use_bf16=False, batch_tile=128))
    q2_ref = critic_reference(state2, action2, params)
    assert q2.shape == (B2, 1)
    assert jnp.allclose(q2, q2_ref, atol=1e-4, rtol=1e-4)

    # 3) bf16 MXU operands (f32 accumulation / BN / fc3) on the tiled path;
    #    looser tolerance against the f32 reference.
    q2b = jax.block_until_ready(
        critic_forward(state2, action2, params, use_bf16=True, batch_tile=128))
    assert jnp.allclose(q2b, q2_ref, atol=1e-2, rtol=5e-2)

    print("KERNEL_OK")
</pallas_src>

<mosaic_0001>
module attributes {stable_mosaic.version = 11 : i64} {
  func.func @_critic_fused_kernel(%arg0: memref<8x32xf32, #tpu.memory_space<vmem>>, %arg1: memref<32x128xf32, #tpu.memory_space<vmem>>, %arg2: memref<128x128xf32, #tpu.memory_space<vmem>>, %arg3: memref<32x128xf32, #tpu.memory_space<vmem>>, %arg4: memref<8x128xf32, #tpu.memory_space<vmem>>, %arg5: memref<1x8xf32, #tpu.memory_space<vmem>>) attributes {dimension_semantics = [], scalar_prefetch = 0 : i64, scratch_operands = 0 : i64, tpu.core_type = #tpu.core_type<tc>} {
    %c0 = arith.constant 0 : index
    %c0_0 = arith.constant 0 : index
    %0 = vector.load %arg4[%c0, %c0_0] : memref<8x128xf32, #tpu.memory_space<vmem>>, vector<8x128xf32>
    %c0_1 = arith.constant 0 : index
    %c0_2 = arith.constant 0 : index
    %1 = vector.load %arg0[%c0_1, %c0_2] : memref<8x32xf32, #tpu.memory_space<vmem>>, vector<8x32xf32>
    %c0_3 = arith.constant 0 : index
    %c0_4 = arith.constant 0 : index
    %2 = vector.load %arg1[%c0_3, %c0_4] : memref<32x128xf32, #tpu.memory_space<vmem>>, vector<32x128xf32>
    %cst = arith.constant dense<0.000000e+00> : vector<8x128xf32>
    %3 = tpu.matmul %1, %2, %cst {dimension_numbers = #tpu.dot_dimension_numbers<[1], [0], [0], [1], [0, 0, 1, 1], [], []>} : vector<8x32xf32>, vector<32x128xf32>, vector<8x128xf32> -> vector<8x128xf32>
    %4 = vector.extract_strided_slice %0 {offsets = [0, 0], sizes = [1, 128], strides = [1, 1]} : vector<8x128xf32> to vector<1x128xf32>
    %5 = vector.broadcast %4 : vector<1x128xf32> to vector<8x128xf32>
    %6 = arith.addf %3, %5 : vector<8x128xf32>
    %cst_5 = arith.constant 0.000000e+00 : f32
    %7 = vector.broadcast %cst_5 : f32 to vector<8x128xf32>
    %8 = arith.maximumf %6, %7 : vector<8x128xf32>
    %cst_6 = arith.constant dense<0.000000e+00> : vector<128xf32>
    %9 = vector.multi_reduction <add>, %8, %cst_6 [0] : vector<8x128xf32> to vector<128xf32>
    %10 = vector.shape_cast %9 : vector<128xf32> to vector<1x128xf32>
    %cst_7 = arith.constant 8.000000e+00 : f32
    %11 = vector.broadcast %cst_7 : f32 to vector<1x128xf32>
    %12 = arith.divf %10, %11 : vector<1x128xf32>
    %13 = arith.mulf %8, %8 : vector<8x128xf32>
    %cst_8 = arith.constant dense<0.000000e+00> : vector<128xf32>
    %14 = vector.multi_reduction <add>, %13, %cst_8 [0] : vector<8x128xf32> to vector<128xf32>
    %15 = vector.shape_cast %14 : vector<128xf32> to vector<1x128xf32>
    %cst_9 = arith.constant 8.000000e+00 : f32
    %16 = vector.broadcast %cst_9 : f32 to vector<1x128xf32>
    %17 = arith.divf %15, %16 : vector<1x128xf32>
    %18 = vector.extract_strided_slice %0 {offsets = [1, 0], sizes = [1, 128], strides = [1, 1]} : vector<8x128xf32> to vector<1x128xf32>
    %19 = vector.extract_strided_slice %0 {offsets = [2, 0], sizes = [1, 128], strides = [1, 1]} : vector<8x128xf32> to vector<1x128xf32>
    %20 = vector.extract_strided_slice %0 {offsets = [3, 0], sizes = [1, 128], strides = [1, 1]} : vector<8x128xf32> to vector<1x128xf32>
    %21 = vector.extract_strided_slice %0 {offsets = [4, 0], sizes = [1, 128], strides = [1, 1]} : vector<8x128xf32> to vector<1x128xf32>
    %22 = vector.extract_strided_slice %0 {offsets = [5, 0], sizes = [1, 1], strides = [1, 1]} : vector<8x128xf32> to vector<1x1xf32>
    %23 = arith.mulf %12, %12 : vector<1x128xf32>
    %24 = arith.subf %17, %23 : vector<1x128xf32>
    %cst_10 = arith.constant 0.000000e+00 : f32
    %25 = vector.broadcast %cst_10 : f32 to vector<1x128xf32>
    %26 = arith.maximumf %24, %25 : vector<1x128xf32>
    %cst_11 = arith.constant 9.99999974E-6 : f32
    %27 = vector.broadcast %cst_11 : f32 to vector<1x128xf32>
    %28 = arith.addf %26, %27 : vector<1x128xf32>
    %29 = math.rsqrt %28 : vector<1x128xf32>
    %30 = arith.mulf %18, %29 : vector<1x128xf32>
    %31 = arith.mulf %12, %30 : vector<1x128xf32>
    %32 = arith.subf %19, %31 : vector<1x128xf32>
    %33 = vector.broadcast %30 : vector<1x128xf32> to vector<8x128xf32>
    %34 = arith.mulf %8, %33 : vector<8x128xf32>
    %35 = vector.broadcast %32 : vector<1x128xf32> to vector<8x128xf32>
    %36 = arith.addf %34, %35 : vector<8x128xf32>
    %c0_12 = arith.constant 0 : index
    %c0_13 = arith.constant 0 : index
    %37 = vector.load %arg2[%c0_12, %c0_13] : memref<128x128xf32, #tpu.memory_space<vmem>>, vector<128x128xf32>
    %cst_14 = arith.constant dense<0.000000e+00> : vector<8x128xf32>
    %38 = tpu.matmul %36, %37, %cst_14 {dimension_numbers = #tpu.dot_dimension_numbers<[1], [0], [0], [1], [0, 0, 1, 1], [], []>} : vector<8x128xf32>, vector<128x128xf32>, vector<8x128xf32> -> vector<8x128xf32>
    %c0_15 = arith.constant 0 : index
    %c0_16 = arith.constant 0 : index
    %39 = vector.load %arg3[%c0_15, %c0_16] : memref<32x128xf32, #tpu.memory_space<vmem>>, vector<32x128xf32>
    %cst_17 = arith.constant dense<0.000000e+00> : vector<8x128xf32>
    %40 = tpu.matmul %1, %39, %cst_17 {dimension_numbers = #tpu.dot_dimension_numbers<[1], [0], [0], [1], [0, 0, 1, 1], [], []>} : vector<8x32xf32>, vector<32x128xf32>, vector<8x128xf32> -> vector<8x128xf32>
    %41 = arith.addf %38, %40 : vector<8x128xf32>
    %42 = vector.broadcast %20 : vector<1x128xf32> to vector<8x128xf32>
    %43 = arith.addf %41, %42 : vector<8x128xf32>
    %cst_18 = arith.constant 0.000000e+00 : f32
    %44 = vector.broadcast %cst_18 : f32 to vector<8x128xf32>
    %45 = arith.maximumf %43, %44 : vector<8x128xf32>
    %cst_19 = arith.constant dense<0.000000e+00> : vector<1x8xf32>
    %46 = tpu.matmul %21, %45, %cst_19 {dimension_numbers = #tpu.dot_dimension_numbers<[1], [1], [0], [0], [0, 0, 1, 0], [], []>} : vector<1x128xf32>, vector<8x128xf32>, vector<1x8xf32> -> vector<1x8xf32>
    %47 = vector.broadcast %22 : vector<1x1xf32> to vector<1x8xf32>
    %48 = arith.addf %46, %47 : vector<1x8xf32>
    %c0_20 = arith.constant 0 : index
    %c0_21 = arith.constant 0 : index
    %49 = vector.load %arg5[%c0_20, %c0_21] : memref<1x8xf32, #tpu.memory_space<vmem>>, vector<1x8xf32>
    tpu.vector_store %arg5[%c0_20, %c0_21], %48 {strides = array<i32>} : memref<1x8xf32, #tpu.memory_space<vmem>>, vector<1x8xf32>,
    return
  }
}

</mosaic_0001>

<llo_original>
// kernel: tpu_custom_call.1
$region0: #{tpu_custom_call.1}
  #allocation0 [shape = 'u32[]', space=smem, size = 0x4, offset = 0x4, fixed_abs, tag = 'smem constant byte address 0x4 - core index']
  #allocation1 [shape = 'u32[144,128]{1,0:T(1,128)}', space=vmem, size = 0x12000, scoped, tag = 'internal scratch']
  %s0 = inlined_call_operand.hbm [shape: f32[8,32], index: 0, kind: input, shape index: {}]
  %s1 = inlined_call_operand.hbm [shape: f32[32,128], index: 1, kind: input, shape index: {}]
  %s2 = inlined_call_operand.hbm [shape: f32[128,128], index: 2, kind: input, shape index: {}]
  %s3 = inlined_call_operand.hbm [shape: f32[32,128], index: 3, kind: input, shape index: {}]
  %s4 = inlined_call_operand.hbm [shape: f32[8,128], index: 4, kind: input, shape index: {}]
  %s5 = inlined_call_operand.hbm [shape: f32[1,8], index: 5, kind: output, shape index: {}]
  %s6 = sld [smem:[#allocation0]]
  $region50: #{tpu_custom_call.1} parent=0
    _
  %s8 = ssub.s32 1, %s6
  %s9 = scalar_select 0, %s8, %s6
  $region1: #{tpu_custom_call.1} parent=0
    #allocation2 [shape = 'u8[4096]{0}', space=vmem, size = 0x1000, scoped, tag = 'input window, operand 0, single buffered']
    #allocation3 [shape = 's32[1]{0}', space=sflag, size = 0x4, scoped, tag = 'scoped memory for tpu_custom_call.1']
    #allocation4 [shape = 's32[1]{0}', space=sflag, size = 0x4, scoped, tag = 'scoped memory for tpu_custom_call.1']
    #allocation5 [shape = 'u8[16384]{0}', space=vmem, size = 0x4000, scoped, tag = 'input window, operand 1, single buffered']
    #allocation6 [shape = 's32[1]{0}', space=sflag, size = 0x4, scoped, tag = 'scoped memory for tpu_custom_call.1']
    #allocation7 [shape = 'u8[65536]{0}', space=vmem, size = 0x10000, scoped, tag = 'input window, operand 2, single buffered']
    #allocation8 [shape = 'u8[16384]{0}', space=vmem, size = 0x4000, scoped, tag = 'input window, operand 3, single buffered']
    #allocation9 [shape = 's32[1]{0}', space=sflag, size = 0x4, scoped, tag = 'scoped memory for tpu_custom_call.1']
    #allocation10 [shape = 'u8[4096]{0}', space=vmem, size = 0x1000, scoped, tag = 'input window, operand 4, single buffered']
    #allocation11 [shape = 'u8[512]{0}', space=vmem, size = 0x400, scoped, tag = 'output window, operand 0, single buffered']
    %10 = vsyncpa [#allocation3], 0
    %11 = vsyncpa [#allocation6], 0
    %12 = vsyncpa [#allocation9], 0
    %13 = vsyncpa [#allocation4], 0
    // Predicated region
    $region2: #{tpu_custom_call.1} parent=1 // pred_check
      _
    $region3: #{tpu_custom_call.1} parent=1 // pred_check_branch
      %15 = sbr.rel (0) target = $region5
    $region4: #{tpu_custom_call.1} parent=1 // pred_region
      %s17 = ssub.s32 128, 128
      %18 = vsyncadd [#allocation3], %s17
      %s20 = sshll.u32 [#allocation2], 4
      %s21 = int_to_ptr.vmem [resolvable:$true] %s20
      %23 = dma.hbm_to_vmem [thread:$0]  %s0, 128, %s21, [#allocation3]
    $region5: #{tpu_custom_call.1} parent=1 // pred_fallthru
      _
    // Predicated region
    $region6: #{tpu_custom_call.1} parent=1 // pred_check
      _
    $region7: #{tpu_custom_call.1} parent=1 // pred_check_branch
      %25 = sbr.rel (0) target = $region9
    $region8: #{tpu_custom_call.1} parent=1 // pred_region
      %s27 = ssub.s32 512, 512
      %28 = vsyncadd [#allocation6], %s27
      %s29 = sshll.u32 [#allocation5], 4
      %s30 = int_to_ptr.vmem [resolvable:$true] %s29
      %35 = dma.hbm_to_vmem [thread:$0]  %s1, 512, %s30, [#allocation6], 128, 128, 8
    $region9: #{tpu_custom_call.1} parent=1 // pred_fallthru
      _
    // Predicated region
    $region10: #{tpu_custom_call.1} parent=1 // pred_check
      _
    $region11: #{tpu_custom_call.1} parent=1 // pred_check_branch
      %37 = sbr.rel (0) target = $region13
    $region12: #{tpu_custom_call.1} parent=1 // pred_region
      %s39 = ssub.s32 2048, 2048
      %40 = vsyncadd [#allocation6], %s39
      %s41 = sshll.u32 [#allocation7], 4
      %s42 = int_to_ptr.vmem [resolvable:$true] %s41
      %47 = dma.hbm_to_vmem [thread:$0]  %s2, 2048, %s42, [#allocation6], 128, 128, 8
    $region13: #{tpu_custom_call.1} parent=1 // pred_fallthru
      _
    // Predicated region
    $region14: #{tpu_custom_call.1} parent=1 // pred_check
      _
    $region15: #{tpu_custom_call.1} parent=1 // pred_check_branch
      %49 = sbr.rel (0) target = $region17
    $region16: #{tpu_custom_call.1} parent=1 // pred_region
      %s51 = ssub.s32 512, 512
      %52 = vsyncadd [#allocation9], %s51
      %s53 = sshll.u32 [#allocation8], 4
      %s54 = int_to_ptr.vmem [resolvable:$true] %s53
      %59 = dma.hbm_to_vmem [thread:$0]  %s3, 512, %s54, [#allocation9], 128, 128, 8
    $region17: #{tpu_custom_call.1} parent=1 // pred_fallthru
      _
    // Predicated region
    $region18: #{tpu_custom_call.1} parent=1 // pred_check
      _
    $region19: #{tpu_custom_call.1} parent=1 // pred_check_branch
      %61 = sbr.rel (0) target = $region21
    $region20: #{tpu_custom_call.1} parent=1 // pred_region
      %s63 = ssub.s32 128, 128
      %64 = vsyncadd [#allocation9], %s63
      %s66 = sshll.u32 [#allocation10], 4
      %s67 = int_to_ptr.vmem [resolvable:$true] %s66
      %69 = dma.hbm_to_vmem [thread:$0]  %s4, 128, %s67, [#allocation9]
    $region21: #{tpu_custom_call.1} parent=1 // pred_fallthru
      _
    // Predicated region
    $region22: #{tpu_custom_call.1} parent=1 // pred_check
      _
    $region23: #{tpu_custom_call.1} parent=1 // pred_check_branch
      %71 = sbr.rel (0) target = $region25
    $region24: #{tpu_custom_call.1} parent=1 // pred_region
      %72 = dma.done [#allocation3], 128
    $region25: #{tpu_custom_call.1} parent=1 // pred_fallthru
      _
    // Predicated region
    $region26: #{tpu_custom_call.1} parent=1 // pred_check
      _
    $region27: #{tpu_custom_call.1} parent=1 // pred_check_branch
      %74 = sbr.rel (0) target = $region29
    $region28: #{tpu_custom_call.1} parent=1 // pred_region
      %75 = dma.done [#allocation6], 512
    $region29: #{tpu_custom_call.1} parent=1 // pred_fallthru
      _
    // Predicated region
    $region30: #{tpu_custom_call.1} parent=1 // pred_check
      _
    $region31: #{tpu_custom_call.1} parent=1 // pred_check_branch
      %77 = sbr.rel (0) target = $region33
    $region32: #{tpu_custom_call.1} parent=1 // pred_region
      %78 = dma.done [#allocation6], 2048
    $region33: #{tpu_custom_call.1} parent=1 // pred_fallthru
      _
    // Predicated region
    $region34: #{tpu_custom_call.1} parent=1 // pred_check
      _
    $region35: #{tpu_custom_call.1} parent=1 // pred_check_branch
      %80 = sbr.rel (0) target = $region37
    $region36: #{tpu_custom_call.1} parent=1 // pred_region
      %81 = dma.done [#allocation9], 512
    $region37: #{tpu_custom_call.1} parent=1 // pred_fallthru
      _
    // Predicated region
    $region38: #{tpu_custom_call.1} parent=1 // pred_check
      _
    $region39: #{tpu_custom_call.1} parent=1 // pred_check_branch
      %83 = sbr.rel (0) target = $region41
    $region40: #{tpu_custom_call.1} parent=1 // pred_region
      %84 = dma.done [#allocation9], 128
    $region41: #{tpu_custom_call.1} parent=1 // pred_fallthru
      _
    %v85 = vld [vmem:[#allocation10] sm:$0xff]
    %v86 = vld [vmem:[#allocation2] sm:$0xff]
    %v87 = vld [vmem:[#allocation5] sm:$0xff]
    %v88 = vld [vmem:[#allocation5 + $0x8] sm:$0xff]
    %v89 = vld [vmem:[#allocation5 + $0x10] sm:$0xff]
    %v90 = vld [vmem:[#allocation5 + $0x18] sm:$0xff]
    %v91 = vlaneseq
    %v92 = vshrl.u32 %v91, 7
    %v93 = vsub.s32 0, %v92
    %v94 = vrot.slane %v85, %v93
    %vm95 = vcmask 261120
    %v97 = vsel %vm95, %v86, 0
    %99 = vmatprep.subr.mxu0 0.0
    %100 = vmatpush1.msra.mxu0 0.0
    %101 = vmatprep.subr.mxu0 0.0
    %102 = vmatpush1.msra.mxu0 0.0
    %103 = vmatprep.subr.mxu0 0.0
    %104 = vmatpush1.msra.mxu0 0.0
    %105 = vmatprep.subr.mxu0 0.0
    %106 = vmatpush1.msra.mxu0 0.0
    %107 = vmatprep.subr.mxu0 0.0
    %108 = vmatpush1.msra.mxu0 0.0
    %109 = vmatprep.subr.mxu0 0.0
    %110 = vmatpush1.msra.mxu0 0.0
    %111 = vmatprep.subr.mxu0 0.0
    %112 = vmatpush1.msra.mxu0 0.0
    %113 = vmatprep.subr.mxu0 0.0
    %114 = vmatpush1.msra.mxu0 0.0
    %115 = vmatprep.subr.mxu0 0.0
    %116 = vmatpush1.msra.mxu0 0.0
    %117 = vmatprep.subr.mxu0 0.0
    %118 = vmatpush1.msra.mxu0 0.0
    %119 = vmatprep.subr.mxu0 0.0
    %120 = vmatpush1.msra.mxu0 0.0
    %121 = vmatprep.subr.mxu0 0.0
    %122 = vmatpush1.msra.mxu0 0.0
    %123 = vmatprep.subr.mxu0 0.0
    %124 = vmatpush1.msra.mxu0 %v90
    %125 = vmatprep.subr.mxu0 0.0
    %126 = vmatpush1.msra.mxu0 %v89
    %127 = vmatprep.subr.mxu0 0.0
    %128 = vmatpush1.msra.mxu0 %v88
    %129 = vmatprep.subr.mxu0 0.0
    %130 = vmatpush1.msra.mxu0 %v87
    %131 = vmatprep.subr.mxu0 0.0
    %132 = vmatpush2.msra.mxu0 0.0
    %133 = vmatprep.subr.mxu0 0.0
    %134 = vmatpush2.msra.mxu0 0.0
    %135 = vmatprep.subr.mxu0 0.0
    %136 = vmatpush2.msra.mxu0 0.0
    %137 = vmatprep.subr.mxu0 0.0
    %138 = vmatpush2.msra.mxu0 0.0
    %139 = vmatprep.subr.mxu0 0.0
    %140 = vmatpush2.msra.mxu0 0.0
    %141 = vmatprep.subr.mxu0 0.0
    %142 = vmatpush2.msra.mxu0 0.0
    %143 = vmatprep.subr.mxu0 0.0
    %144 = vmatpush2.msra.mxu0 0.0
    %145 = vmatprep.subr.mxu0 0.0
    %146 = vmatpush2.msra.mxu0 0.0
    %147 = vmatprep.subr.mxu0 0.0
    %148 = vmatpush2.msra.mxu0 0.0
    %149 = vmatprep.subr.mxu0 0.0
    %150 = vmatpush2.msra.mxu0 0.0
    %151 = vmatprep.subr.mxu0 0.0
    %152 = vmatpush2.msra.mxu0 0.0
    %153 = vmatprep.subr.mxu0 0.0
    %154 = vmatpush2.msra.mxu0 0.0
    %155 = vmatprep.subr.mxu0 0.0
    %156 = vmatpush2.msra.mxu0 0.0
    %157 = vmatprep.subr.mxu0 0.0
    %158 = vmatpush2.msra.mxu0 0.0
    %159 = vmatprep.subr.mxu0 0.0
    %160 = vmatpush2.msra.mxu0 0.0
    %161 = vmatprep.subr.mxu0 0.0
    %162 = vmatpush2.msra.mxu0 0.0
    %163 = vmatprep.mubr.f32.mxu0 0.0
    %164 = vmatmul.mubr.f32.gmra.mxu0 %v97
    %v165 = vpop.f32.mrf.mxu0
    %v166 = vadd.f32 %v94, %v165
    %v167 = vpop.f32.mrf.mxu0
    %168 = vdwg.mxu0
    %v169 = vmax.f32 %v166, 0.0
    %v170 = vrot.slane %v169, 4
    %v171 = vadd.f32 %v169, %v170
    %v172 = vrot.slane %v171, 2
    %v173 = vadd.f32 %v171, %v172
    %v174 = vrot.slane %v173, 1
    %v175 = vadd.f32 %v173, %v174
    %v176 = vrcp.pop 8.0
    %v177 = vmul.f32 %v175, %v176
    %v178 = vmul.f32 %v169, %v169
    %v179 = vrot.slane %v178, 4
    %v180 = vadd.f32 %v178, %v179
    %v181 = vrot.slane %v180, 2
    %v182 = vadd.f32 %v180, %v181
    %v183 = vrot.slane %v182, 1
    %v184 = vadd.f32 %v182, %v183
    %v185 = vmul.f32 %v184, %v176
    %v186 = vmul.f32 %v177, %v177
    %v187 = vsub.f32 %v185, %v186
    %v188 = vmax.f32 %v187, 0.0
    %v189 = vadd.f32 %v188, 1e-05
    %v190 = vrsqrt.pop %v189
    %v191 = vmul.f32 %v85, %v190
    %v192 = vmul.f32 %v177, %v191
    %v194 = vrot.slane %v192, 7
    %v196 = vsub.f32 %v85, %v194
    %v197 = vlaneseq
    %v198 = vshrl.u32 %v197, 7
    %v199 = vsub.s32 1, %v198
    %v200 = vrot.slane %v191, %v199
    %v201 = vmul.f32 %v169, %v200
    %v202 = vlaneseq
    %v203 = vshrl.u32 %v202, 7
    %v204 = vsub.s32 2, %v203
    %v205 = vrot.slane %v196, %v204
    %v206 = vadd.f32 %v201, %v205
    %v207 = vld [vmem:[#allocation7] sm:$0xff]
    %v208 = vld [vmem:[#allocation7 + $0x8] sm:$0xff]
    %v209 = vld [vmem:[#allocation7 + $0x10] sm:$0xff]
    %v210 = vld [vmem:[#allocation7 + $0x18] sm:$0xff]
    %v211 = vld [vmem:[#allocation7 + $0x20] sm:$0xff]
    %v212 = vld [vmem:[#allocation7 + $0x28] sm:$0xff]
    %v213 = vld [vmem:[#allocation7 + $0x30] sm:$0xff]
    %v214 = vld [vmem:[#allocation7 + $0x38] sm:$0xff]
    %v215 = vld [vmem:[#allocation7 + $0x40] sm:$0xff]
    %v216 = vld [vmem:[#allocation7 + $0x48] sm:$0xff]
    %v217 = vld [vmem:[#allocation7 + $0x50] sm:$0xff]
    %v218 = vld [vmem:[#allocation7 + $0x58] sm:$0xff]
    %v219 = vld [vmem:[#allocation7 + $0x60] sm:$0xff]
    %v220 = vld [vmem:[#allocation7 + $0x68] sm:$0xff]
    %v221 = vld [vmem:[#allocation7 + $0x70] sm:$0xff]
    %v222 = vld [vmem:[#allocation7 + $0x78] sm:$0xff]
    %v223 = vld [vmem:[#allocation8] sm:$0xff]
    %v224 = vld [vmem:[#allocation8 + $0x8] sm:$0xff]
    %v225 = vld [vmem:[#allocation8 + $0x10] sm:$0xff]
    %v226 = vld [vmem:[#allocation8 + $0x18] sm:$0xff]
    %227 = vmatprep.subr.mxu0 0.0
    %228 = vmatpush1.msra.mxu0 0.0
    %229 = vmatprep.subr.mxu0 0.0
    %230 = vmatpush1.msra.mxu0 0.0
    %231 = vmatprep.subr.mxu0 0.0
    %232 = vmatpush1.msra.mxu0 0.0
    %233 = vmatprep.subr.mxu0 0.0
    %234 = vmatpush1.msra.mxu0 0.0
    %235 = vmatprep.subr.mxu0 0.0
    %236 = vmatpush1.msra.mxu0 0.0
    %237 = vmatprep.subr.mxu0 0.0
    %238 = vmatpush1.msra.mxu0 0.0
    %239 = vmatprep.subr.mxu0 0.0
    %240 = vmatpush1.msra.mxu0 0.0
    %241 = vmatprep.subr.mxu0 0.0
    %242 = vmatpush1.msra.mxu0 0.0
    %243 = vmatprep.subr.mxu0 0.0
    %244 = vmatpush1.msra.mxu0 0.0
    %245 = vmatprep.subr.mxu0 0.0
    %246 = vmatpush1.msra.mxu0 0.0
    %247 = vmatprep.subr.mxu0 0.0
    %248 = vmatpush1.msra.mxu0 0.0
    %249 = vmatprep.subr.mxu0 0.0
    %250 = vmatpush1.msra.mxu0 0.0
    %251 = vmatprep.subr.mxu0 0.0
    %252 = vmatpush1.msra.mxu0 %v226
    %253 = vmatprep.subr.mxu0 0.0
    %254 = vmatpush1.msra.mxu0 %v225
    %255 = vmatprep.subr.mxu0 0.0
    %256 = vmatpush1.msra.mxu0 %v224
    %257 = vmatprep.subr.mxu0 0.0
    %258 = vmatpush1.msra.mxu0 %v223
    %259 = vmatprep.subr.mxu0 0.0
    %260 = vmatpush2.msra.mxu0 0.0
    %261 = vmatprep.subr.mxu0 0.0
    %262 = vmatpush2.msra.mxu0 0.0
    %263 = vmatprep.subr.mxu0 0.0
    %264 = vmatpush2.msra.mxu0 0.0
    %265 = vmatprep.subr.mxu0 0.0
    %266 = vmatpush2.msra.mxu0 0.0
    %267 = vmatprep.subr.mxu0 0.0
    %268 = vmatpush2.msra.mxu0 0.0
    %269 = vmatprep.subr.mxu0 0.0
    %270 = vmatpush2.msra.mxu0 0.0
    %271 = vmatprep.subr.mxu0 0.0
    %272 = vmatpush2.msra.mxu0 0.0
    %273 = vmatprep.subr.mxu0 0.0
    %274 = vmatpush2.msra.mxu0 0.0
    %275 = vmatprep.subr.mxu0 0.0
    %276 = vmatpush2.msra.mxu0 0.0
    %277 = vmatprep.subr.mxu0 0.0
    %278 = vmatpush2.msra.mxu0 0.0
    %279 = vmatprep.subr.mxu0 0.0
    %280 = vmatpush2.msra.mxu0 0.0
    %281 = vmatprep.subr.mxu0 0.0
    %282 = vmatpush2.msra.mxu0 0.0
    %283 = vmatprep.subr.mxu0 0.0
    %284 = vmatpush2.msra.mxu0 0.0
    %285 = vmatprep.subr.mxu0 0.0
    %286 = vmatpush2.msra.mxu0 0.0
    %287 = vmatprep.subr.mxu0 0.0
    %288 = vmatpush2.msra.mxu0 0.0
    %289 = vmatprep.subr.mxu0 0.0
    %290 = vmatpush2.msra.mxu0 0.0
    %291 = vmatprep.mubr.f32.mxu0 0.0
    %292 = vmatmul.mubr.f32.gmra.mxu0 %v97
    %v293 = vpop.f32.mrf.mxu0
    %v294 = vadd.f32 0.0, %v293
    %v295 = vpop.f32.mrf.mxu0
    %296 = vdwg.mxu0
    %297 = vmatprep.subr.mxu0 0.0
    %298 = vmatpush1.msra.mxu0 %v222
    %299 = vmatprep.subr.mxu0 0.0
    %300 = vmatpush1.msra.mxu0 %v221
    %301 = vmatprep.subr.mxu0 0.0
    %302 = vmatpush1.msra.mxu0 %v220
    %303 = vmatprep.subr.mxu0 0.0
    %304 = vmatpush1.msra.mxu0 %v219
    %305 = vmatprep.subr.mxu0 0.0
    %306 = vmatpush1.msra.mxu0 %v218
    %307 = vmatprep.subr.mxu0 0.0
    %308 = vmatpush1.msra.mxu0 %v217
    %309 = vmatprep.subr.mxu0 0.0
    %310 = vmatpush1.msra.mxu0 %v216
    %311 = vmatprep.subr.mxu0 0.0
    %312 = vmatpush1.msra.mxu0 %v215
    %313 = vmatprep.subr.mxu0 0.0
    %314 = vmatpush1.msra.mxu0 %v214
    %315 = vmatprep.subr.mxu0 0.0
    %316 = vmatpush1.msra.mxu0 %v213
    %317 = vmatprep.subr.mxu0 0.0
    %318 = vmatpush1.msra.mxu0 %v212
    %319 = vmatprep.subr.mxu0 0.0
    %320 = vmatpush1.msra.mxu0 %v211
    %321 = vmatprep.subr.mxu0 0.0
    %322 = vmatpush1.msra.mxu0 %v210
    %323 = vmatprep.subr.mxu0 0.0
    %324 = vmatpush1.msra.mxu0 %v209
    %325 = vmatprep.subr.mxu0 0.0
    %326 = vmatpush1.msra.mxu0 %v208
    %327 = vmatprep.subr.mxu0 0.0
    %328 = vmatpush1.msra.mxu0 %v207
    %329 = vmatprep.subr.mxu0 0.0
    %330 = vmatpush2.msra.mxu0 0.0
    %331 = vmatprep.subr.mxu0 0.0
    %332 = vmatpush2.msra.mxu0 0.0
    %333 = vmatprep.subr.mxu0 0.0
    %334 = vmatpush2.msra.mxu0 0.0
    %335 = vmatprep.subr.mxu0 0.0
    %336 = vmatpush2.msra.mxu0 0.0
    %337 = vmatprep.subr.mxu0 0.0
    %338 = vmatpush2.msra.mxu0 0.0
    %339 = vmatprep.subr.mxu0 0.0
    %340 = vmatpush2.msra.mxu0 0.0
    %341 = vmatprep.subr.mxu0 0.0
    %342 = vmatpush2.msra.mxu0 0.0
    %343 = vmatprep.subr.mxu0 0.0
    %344 = vmatpush2.msra.mxu0 0.0
    %345 = vmatprep.subr.mxu0 0.0
    %346 = vmatpush2.msra.mxu0 0.0
    %347 = vmatprep.subr.mxu0 0.0
    %348 = vmatpush2.msra.mxu0 0.0
    %349 = vmatprep.subr.mxu0 0.0
    %350 = vmatpush2.msra.mxu0 0.0
    %351 = vmatprep.subr.mxu0 0.0
    %352 = vmatpush2.msra.mxu0 0.0
    %353 = vmatprep.subr.mxu0 0.0
    %354 = vmatpush2.msra.mxu0 0.0
    %355 = vmatprep.subr.mxu0 0.0
    %356 = vmatpush2.msra.mxu0 0.0
    %357 = vmatprep.subr.mxu0 0.0
    %358 = vmatpush2.msra.mxu0 0.0
    %359 = vmatprep.subr.mxu0 0.0
    %360 = vmatpush2.msra.mxu0 0.0
    %361 = vmatprep.mubr.f32.mxu0 0.0
    %362 = vmatmul.mubr.f32.gmra.mxu0 %v206
    %v363 = vpop.f32.mrf.mxu0
    %v364 = vadd.f32 %v294, %v363
    %v365 = vpop.f32.mrf.mxu0
    %366 = vdwg.mxu0
    %v367 = vlaneseq
    %v368 = vshrl.u32 %v367, 7
    %v369 = vsub.s32 3, %v368
    %v370 = vrot.slane %v85, %v369
    %v371 = vadd.f32 %v364, %v370
    %v372 = vmax.f32 %v371, 0.0
    %374 = vset.pattern.permute.xlu0 0
    %375 = vperm.xlu0 %374, %v85
    %v376 = vpop.permute.xlu0 %375
    %v377 = vrot.slane %v85, 4
    %v379 = vrot.slane %v376, 5
    %381 = vmatprep.subr.mxu0 0.0
    %382 = vmatpush1.xpose.msra.mxu0 0.0
    %383 = vmatprep.subr.mxu0 0.0
    %384 = vmatpush1.xpose.msra.mxu0 0.0
    %385 = vmatprep.subr.mxu0 0.0
    %386 = vmatpush1.xpose.msra.mxu0 0.0
    %387 = vmatprep.subr.mxu0 0.0
    %388 = vmatpush1.xpose.msra.mxu0 0.0
    %389 = vmatprep.subr.mxu0 0.0
    %390 = vmatpush1.xpose.msra.mxu0 0.0
    %391 = vmatprep.subr.mxu0 0.0
    %392 = vmatpush1.xpose.msra.mxu0 0.0
    %393 = vmatprep.subr.mxu0 0.0
    %394 = vmatpush1.xpose.msra.mxu0 0.0
    %395 = vmatprep.subr.mxu0 0.0
    %396 = vmatpush1.xpose.msra.mxu0 0.0
    %397 = vmatprep.subr.mxu0 0.0
    %398 = vmatpush1.xpose.msra.mxu0 0.0
    %399 = vmatprep.subr.mxu0 0.0
    %400 = vmatpush1.xpose.msra.mxu0 0.0
    %401 = vmatprep.subr.mxu0 0.0
    %402 = vmatpush1.xpose.msra.mxu0 0.0
    %403 = vmatprep.subr.mxu0 0.0
    %404 = vmatpush1.xpose.msra.mxu0 0.0
    %405 = vmatprep.subr.mxu0 0.0
    %406 = vmatpush1.xpose.msra.mxu0 0.0
    %407 = vmatprep.subr.mxu0 0.0
    %408 = vmatpush1.xpose.msra.mxu0 0.0
    %409 = vmatprep.subr.mxu0 0.0
    %410 = vmatpush1.xpose.msra.mxu0 0.0
    %411 = vmatprep.subr.mxu0 0.0
    %412 = vmatpush1.xpose.msra.mxu0 %v372
    %413 = vmatprep.subr.mxu0 0.0
    %414 = vmatpush2.xpose.msra.mxu0 0.0
    %415 = vmatprep.subr.mxu0 0.0
    %416 = vmatpush2.xpose.msra.mxu0 0.0
    %417 = vmatprep.subr.mxu0 0.0
    %418 = vmatpush2.xpose.msra.mxu0 0.0
    %419 = vmatprep.subr.mxu0 0.0
    %420 = vmatpush2.xpose.msra.mxu0 0.0
    %421 = vmatprep.subr.mxu0 0.0
    %422 = vmatpush2.xpose.msra.mxu0 0.0
    %423 = vmatprep.subr.mxu0 0.0
    %424 = vmatpush2.xpose.msra.mxu0 0.0
    %425 = vmatprep.subr.mxu0 0.0
    %426 = vmatpush2.xpose.msra.mxu0 0.0
    %427 = vmatprep.subr.mxu0 0.0
    %428 = vmatpush2.xpose.msra.mxu0 0.0
    %429 = vmatprep.subr.mxu0 0.0
    %430 = vmatpush2.xpose.msra.mxu0 0.0
    %431 = vmatprep.subr.mxu0 0.0
    %432 = vmatpush2.xpose.msra.mxu0 0.0
    %433 = vmatprep.subr.mxu0 0.0
    %434 = vmatpush2.xpose.msra.mxu0 0.0
    %435 = vmatprep.subr.mxu0 0.0
    %436 = vmatpush2.xpose.msra.mxu0 0.0
    %437 = vmatprep.subr.mxu0 0.0
    %438 = vmatpush2.xpose.msra.mxu0 0.0
    %439 = vmatprep.subr.mxu0 0.0
    %440 = vmatpush2.xpose.msra.mxu0 0.0
    %441 = vmatprep.subr.mxu0 0.0
    %442 = vmatpush2.xpose.msra.mxu0 0.0
    %443 = vmatprep.subr.mxu0 0.0
    %444 = vmatpush2.xpose.msra.mxu0 0.0
    %445 = vmatprep.mubr.f32.mxu0 0.0
    %446 = vmatmul.mubr.f32.gmra.mxu0 %v377
    %v447 = vpop.f32.mrf.mxu0
    %v448 = vadd.f32 %v379, %v447
    %v449 = vpop.f32.mrf.mxu0
    %450 = vdwg.mxu0
    %vm451 = vcmask 57344
    %452 = vst.msk [vmem:[#allocation11] sm:$0x1] %vm451, %v448
    // Predicated region
    $region42: #{tpu_custom_call.1} parent=1 // pred_check
      _
    $region43: #{tpu_custom_call.1} parent=1 // pred_check_branch
      %454 = sbr.rel (0) target = $region45
    $region44: #{tpu_custom_call.1} parent=1 // pred_region
      %s456 = ssub.s32 16, 16
      %457 = vsyncadd [#allocation4], %s456
      %s459 = sshll.u32 [#allocation11], 4
      %s460 = int_to_ptr.vmem [resolvable:$true] %s459
      %462 = dma.vmem_to_hbm [thread:$0]  %s460, 16, %s5, [#allocation4]
    $region45: #{tpu_custom_call.1} parent=1 // pred_fallthru
      _
    // Predicated region
    $region46: #{tpu_custom_call.1} parent=1 // pred_check
      _
    $region47: #{tpu_custom_call.1} parent=1 // pred_check_branch
      %464 = sbr.rel (0) target = $region49
    $region48: #{tpu_custom_call.1} parent=1 // pred_region
      %465 = dma.done [#allocation4], 16
    $region49: #{tpu_custom_call.1} parent=1 // pred_fallthru
      _
    %466 = vsyncpa [#allocation3], 1
    %467 = vsyncpa [#allocation6], 1
    %468 = vsyncpa [#allocation9], 1
    %469 = vsyncpa [#allocation4], 1

</llo_original>
